<compile_context>
chip_gen: v7x
topology: tpu7x:2x2x1
jax: 0.10.0
libtpu: 0.0.40
codegen_flags: <defaults>
</compile_context>

<pallas_src>
import functools

import jax
import jax.numpy as jnp
from jax.experimental import pallas as pl
from jax.experimental.pallas import tpu as pltpu


def _edge_mlp_kernel(x_ref, w1_ref, b1_ref, w2_ref, b2_ref, out_ref):
    # x_ref : (tile_p, P*F_in)   -- P edges packed per row
    # w1_ref: (P*F_in, P*H)      -- block-diagonal copies of W1
    # b1_ref: (1, P*H)  f32      -- tiled bias
    # w2_ref: (P*H, P*F_out)     -- block-diagonal copies of W2
    # b2_ref: (1, P*F_out) f32
    h = jnp.dot(x_ref[...], w1_ref[...], preferred_element_type=jnp.float32)
    h = jnp.maximum(h + b1_ref[...], 0.0)                    # bias + ReLU in f32 (VPU)
    o = jnp.dot(h.astype(w2_ref.dtype), w2_ref[...],
                preferred_element_type=jnp.float32)
    out_ref[...] = (o + b2_ref[...]).astype(out_ref.dtype)


def _block_diag(w, p):
    """(K, N) -> (p*K, p*N) block-diagonal with p copies of w."""
    if p == 1:
        return w
    k, n = w.shape
    eye = jnp.eye(p, dtype=w.dtype)
    return (eye[:, None, :, None] * w[None, :, None, :]).reshape(p * k, p * n)


def _round_up(x, m):
    return ((x + m - 1) // m) * m


def edge_model_forward(nodes, edge_attr, edge_index, params, *,
                       tile_e=512, compute_dtype=jnp.bfloat16):
    """nodes: [N, F_x], edge_attr: [E, F_e], edge_index: [2, E] int32."""
    w1, b1, w2, b2 = params["w1"], params["b1"], params["w2"], params["b2"]
    E, F_e = edge_attr.shape
    _, F_x = nodes.shape
    F_in = F_e + 2 * F_x
    H = w1.shape[1]
    F_out = w2.shape[1]
    assert w1.shape[0] == F_in
    out_dtype = edge_attr.dtype

    # ---- glue (XLA): gather sender/receiver node rows onto edges, fuse concat ----
    recv = jnp.take(nodes, edge_index[1, :], axis=0)   # [E, F_x]
    send = jnp.take(nodes, edge_index[0, :], axis=0)   # [E, F_x]
    x = jnp.concatenate([edge_attr, recv, send], axis=-1).astype(compute_dtype)  # [E, F_in]

    # ---- lane-dense packing: fold P edges per row (pure row-major reshape) ----
    P = (128 // F_out) if (F_out <= 128 and 128 % F_out == 0) else 1

    # packed-space tile (rows of P edges each); keep a multiple of 8 sublanes,
    # clamp so tiny demo inputs are not massively over-padded.
    tile_p = max(8, _round_up(max(1, tile_e // P), 8))
    tile_p = min(tile_p, _round_up(pl.cdiv(E, P), 8))
    edges_per_tile = tile_p * P
    E_pad = _round_up(E, edges_per_tile)
    if E_pad != E:
        x = jnp.pad(x, ((0, E_pad - E), (0, 0)))       # padded rows are sliced off below
    E_p = E_pad // P
    grid = (E_p // tile_p,)

    x_p = x.reshape(E_p, P * F_in)

    w1_p = _block_diag(w1.astype(compute_dtype), P)                   # (P*F_in, P*H)
    w2_p = _block_diag(w2.astype(compute_dtype), P)                   # (P*H, P*F_out)
    b1_p = jnp.tile(b1.astype(jnp.float32), P).reshape(1, P * H)
    b2_p = jnp.tile(b2.astype(jnp.float32), P).reshape(1, P * F_out)

    def edge_tile(i):
        return (i, 0)

    def resident(i):
        return (0, 0)

    itemsize = jnp.dtype(compute_dtype).itemsize
    flops = 2 * E_p * (P * F_in * P * H + P * H * P * F_out)
    bytes_accessed = (E_p * P * F_in * itemsize
                      + (P * F_in * P * H + P * H * P * F_out) * itemsize
                      + (P * H + P * F_out) * 4
                      + E_p * P * F_out * jnp.dtype(out_dtype).itemsize)

    out_p = pl.pallas_call(
        _edge_mlp_kernel,
        out_shape=jax.ShapeDtypeStruct((E_p, P * F_out), out_dtype),
        grid_spec=pltpu.PrefetchScalarGridSpec(
            num_scalar_prefetch=0,
            grid=grid,
            in_specs=[
                pl.BlockSpec((tile_p, P * F_in), edge_tile),     # packed edge features
                pl.BlockSpec((P * F_in, P * H), resident),       # W1 (block diag), resident
                pl.BlockSpec((1, P * H), resident),              # b1
                pl.BlockSpec((P * H, P * F_out), resident),      # W2 (block diag), resident
                pl.BlockSpec((1, P * F_out), resident),          # b2
            ],
            out_specs=pl.BlockSpec((tile_p, P * F_out), edge_tile),
        ),
        compiler_params=pltpu.CompilerParams(
            dimension_semantics=("parallel",)),
        cost_estimate=pl.CostEstimate(
            flops=flops, transcendentals=0, bytes_accessed=bytes_accessed),
    )(x_p, w1_p, b1_p, w2_p, b2_p)

    # Undo the lane packing (row-major reshape) and drop padded rows.
    return out_p.reshape(E_pad, F_out)[:E]


def edge_model_reference(nodes, edge_attr, edge_index, params):
    """Pure-JAX f32 reference mirroring the PyTorch forward."""
    x = jnp.concatenate(
        [edge_attr,
         jnp.take(nodes, edge_index[1, :], axis=0),
         jnp.take(nodes, edge_index[0, :], axis=0)], axis=-1)
    h = jnp.maximum(x @ params["w1"] + params["b1"], 0.0)
    return h @ params["w2"] + params["b2"]


if __name__ == "__main__":
    # Small shapes consistent with the module's forward.
    N, F_x = 32, 8          # number of nodes, node feature dim
    E, F_e = 128, 4         # number of edges, edge feature dim
    H, F_out = 32, 16       # phi_edge hidden / output dims
    F_in = F_e + 2 * F_x    # concat([edge_attr, recv_nodes, send_nodes])

    key = jax.random.PRNGKey(0)
    k_nodes, k_edges, k_idx, k_w1, k_b1, k_w2, k_b2 = jax.random.split(key, 7)

    nodes = jax.random.normal(k_nodes, (N, F_x), dtype=jnp.float32)
    edge_attr = jax.random.normal(k_edges, (E, F_e), dtype=jnp.float32)
    edge_index = jax.random.randint(k_idx, (2, E), 0, N, dtype=jnp.int32)

    params = {
        "w1": jax.random.normal(k_w1, (F_in, H), dtype=jnp.float32) * 0.1,
        "b1": jax.random.normal(k_b1, (H,), dtype=jnp.float32) * 0.1,
        "w2": jax.random.normal(k_w2, (H, F_out), dtype=jnp.float32) * 0.1,
        "b2": jax.random.normal(k_b2, (F_out,), dtype=jnp.float32) * 0.1,
    }

    ref = edge_model_reference(nodes, edge_attr, edge_index, params)

    # Exact-semantics path (f32 streams) -> tight check against the f32 reference.
    run_f32 = jax.jit(functools.partial(
        edge_model_forward, tile_e=512, compute_dtype=jnp.float32))
    out_f32 = jax.block_until_ready(run_f32(nodes, edge_attr, edge_index, params))
    assert out_f32.shape == (E, F_out)
    assert jnp.allclose(out_f32, ref, atol=1e-3, rtol=1e-3), "f32 kernel mismatch"

    # Bandwidth-optimized path (bf16 streams/weights, f32 accumulation).
    run_bf16 = jax.jit(functools.partial(
        edge_model_forward, tile_e=512, compute_dtype=jnp.bfloat16))
    out_bf16 = jax.block_until_ready(run_bf16(nodes, edge_attr, edge_index, params))
    assert out_bf16.shape == (E, F_out)
    assert jnp.allclose(out_bf16, ref, atol=5e-2, rtol=5e-2), "bf16 kernel mismatch"

    print("KERNEL_OK")
</pallas_src>

<mosaic_0001>
module attributes {stable_mosaic.version = 11 : i64} {
  func.func @_edge_mlp_kernel(%arg0: i32, %arg1: memref<16x160xf32, #tpu.memory_space<vmem>>, %arg2: memref<160x256xf32, #tpu.memory_space<vmem>>, %arg3: memref<1x256xf32, #tpu.memory_space<vmem>>, %arg4: memref<256x128xf32, #tpu.memory_space<vmem>>, %arg5: memref<1x128xf32, #tpu.memory_space<vmem>>, %arg6: memref<16x128xf32, #tpu.memory_space<vmem>>) attributes {dimension_semantics = [#tpu.dimension_semantics<parallel>], iteration_bounds = array<i64: 1>, scalar_prefetch = 0 : i64, scratch_operands = 0 : i64, tpu.core_type = #tpu.core_type<tc>, window_params = [{transform_indices = @transform_0, window_bounds = array<i64: 16, 160>}, {pipeline_mode = #tpu.pipeline_mode<synchronous>, transform_indices = @transform_1, window_bounds = array<i64: 160, 256>}, {pipeline_mode = #tpu.pipeline_mode<synchronous>, transform_indices = @transform_2, window_bounds = array<i64: 1, 256>}, {pipeline_mode = #tpu.pipeline_mode<synchronous>, transform_indices = @transform_3, window_bounds = array<i64: 256, 128>}, {pipeline_mode = #tpu.pipeline_mode<synchronous>, transform_indices = @transform_4, window_bounds = array<i64: 1, 128>}, {transform_indices = @transform_5, window_bounds = array<i64: 16, 128>}]} {
    %c0 = arith.constant 0 : index
    %c0_0 = arith.constant 0 : index
    %0 = vector.load %arg1[%c0, %c0_0] : memref<16x160xf32, #tpu.memory_space<vmem>>, vector<16x160xf32>
    %c0_1 = arith.constant 0 : index
    %c0_2 = arith.constant 0 : index
    %1 = vector.load %arg2[%c0_1, %c0_2] : memref<160x256xf32, #tpu.memory_space<vmem>>, vector<160x256xf32>
    %cst = arith.constant dense<0.000000e+00> : vector<16x256xf32>
    %2 = tpu.matmul %0, %1, %cst {dimension_numbers = #tpu.dot_dimension_numbers<[1], [0], [0], [1], [0, 0, 1, 1], [], []>} : vector<16x160xf32>, vector<160x256xf32>, vector<16x256xf32> -> vector<16x256xf32>
    %c0_3 = arith.constant 0 : index
    %c0_4 = arith.constant 0 : index
    %3 = vector.load %arg3[%c0_3, %c0_4] : memref<1x256xf32, #tpu.memory_space<vmem>>, vector<1x256xf32>
    %4 = vector.broadcast %3 : vector<1x256xf32> to vector<16x256xf32>
    %5 = arith.addf %2, %4 : vector<16x256xf32>
    %cst_5 = arith.constant 0.000000e+00 : f32
    %6 = vector.broadcast %cst_5 : f32 to vector<16x256xf32>
    %7 = arith.maximumf %5, %6 : vector<16x256xf32>
    %c0_6 = arith.constant 0 : index
    %c0_7 = arith.constant 0 : index
    %8 = vector.load %arg4[%c0_6, %c0_7] : memref<256x128xf32, #tpu.memory_space<vmem>>, vector<256x128xf32>
    %cst_8 = arith.constant dense<0.000000e+00> : vector<16x128xf32>
    %9 = tpu.matmul %7, %8, %cst_8 {dimension_numbers = #tpu.dot_dimension_numbers<[1], [0], [0], [1], [0, 0, 1, 1], [], []>} : vector<16x256xf32>, vector<256x128xf32>, vector<16x128xf32> -> vector<16x128xf32>
    %c0_9 = arith.constant 0 : index
    %c0_10 = arith.constant 0 : index
    %10 = vector.load %arg5[%c0_9, %c0_10] : memref<1x128xf32, #tpu.memory_space<vmem>>, vector<1x128xf32>
    %11 = vector.broadcast %10 : vector<1x128xf32> to vector<16x128xf32>
    %12 = arith.addf %9, %11 : vector<16x128xf32>
    %c0_11 = arith.constant 0 : index
    %c0_12 = arith.constant 0 : index
    %13 = vector.load %arg6[%c0_11, %c0_12] : memref<16x128xf32, #tpu.memory_space<vmem>>, vector<16x128xf32>
    tpu.vector_store %arg6[%c0_11, %c0_12], %12 {strides = array<i32>} : memref<16x128xf32, #tpu.memory_space<vmem>>, vector<16x128xf32>,
    return
  }
  func.func @transform_0(%arg0: i32) -> (i32, i32) {
    %c0_i32 = arith.constant 0 : i32
    %c0_i32_0 = arith.constant 0 : i32
    return %arg0, %c0_i32 : i32, i32
  }
  func.func @transform_1(%arg0: i32) -> (i32, i32) {
    %c0_i32 = arith.constant 0 : i32
    %c0_i32_0 = arith.constant 0 : i32
    %c0_i32_1 = arith.constant 0 : i32
    return %c0_i32, %c0_i32_0 : i32, i32
  }
  func.func @transform_2(%arg0: i32) -> (i32, i32) {
    %c0_i32 = arith.constant 0 : i32
    %c0_i32_0 = arith.constant 0 : i32
    %c0_i32_1 = arith.constant 0 : i32
    return %c0_i32, %c0_i32_0 : i32, i32
  }
  func.func @transform_3(%arg0: i32) -> (i32, i32) {
    %c0_i32 = arith.constant 0 : i32
    %c0_i32_0 = arith.constant 0 : i32
    %c0_i32_1 = arith.constant 0 : i32
    return %c0_i32, %c0_i32_0 : i32, i32
  }
  func.func @transform_4(%arg0: i32) -> (i32, i32) {
    %c0_i32 = arith.constant 0 : i32
    %c0_i32_0 = arith.constant 0 : i32
    %c0_i32_1 = arith.constant 0 : i32
    return %c0_i32, %c0_i32_0 : i32, i32
  }
  func.func @transform_5(%arg0: i32) -> (i32, i32) {
    %c0_i32 = arith.constant 0 : i32
    %c0_i32_0 = arith.constant 0 : i32
    return %arg0, %c0_i32 : i32, i32
  }
}

</mosaic_0001>

<llo_original>
// kernel: tile.13
$region0: #{tile.13}
  #allocation0 [shape = 's32[1]{0}', space=sflag, size = 0x4, scoped, tag = 'scoped memory for tile.13']
  %s0 = inlined_call_operand.vmem [shape: f32[32], index: 0, kind: input, shape index: {}]
  %s1 = inlined_call_operand.vmem [shape: f32[8,32], index: 1, kind: output, shape index: {}]
  // Predicated region
  $region2: #{tile.13} parent=0 // pred_check
    _
  $region3: #{tile.13} parent=0 // pred_check_branch
    %3 = sbr.rel (0) target = $region5
  $region4: #{tile.13} parent=0 // pred_region
    _
  $region5: #{tile.13} parent=0 // pred_fallthru
    _
  %v4 = vld [vmem:[%s0] ss:$0 sm:$0xff]
  %5 = vst [vmem:[%s1] sm:$0xff] %v4

// kernel: tile.14
$region0: #{tile.14}
  %s0 = inlined_call_operand.vmem [shape: f32[8,32], index: 0, kind: input, shape index: {}]
  %s1 = inlined_call_operand.vmem [shape: f32[1,256], index: 1, kind: output, shape index: {}]
  $region1: #{tile.14} parent=0
    #allocation0 [shape = 'u8[8192]{0}', space=vmem, size = 0x2000, scoped, tag = 'scoped mem for output reshape']
    %s2 = smov 3
    %v3 = vld [vmem:[%s0] ss:$4 sm:%s2]
    %vm4 = vcmask 261120
    %5 = vst.msk [vmem:[#allocation0] ss:$8 sm:$0x3] %vm4, %v3
    %s6 = scalar_lea.vmem %s0, 3
    %s7 = smov 3
    %v8 = vld [vmem:[%s6] ss:$4 sm:%s7]
    %9 = vrot.lane.b32.xlu0 %v8, 96
    %v10 = vpop.permute.xlu0 %9
    %vm11 = vcmask 1048320
    %12 = vst.msk [vmem:[#allocation0] ss:$8 sm:$0x3] %vm11, %v10
    %s13 = scalar_lea.vmem %s0, 2
    %s14 = smov 3
    %v15 = vld [vmem:[%s13] ss:$4 sm:%s14]
    %16 = vrot.lane.b32.xlu0 %v15, 64
    %v17 = vpop.permute.xlu0 %16
    %vm18 = vcmask 785920
    %19 = vst.msk [vmem:[#allocation0] ss:$8 sm:$0x3] %vm18, %v17
    %s20 = scalar_lea.vmem %s0, 1
    %s21 = smov 3
    %v22 = vld [vmem:[%s20] ss:$4 sm:%s21]
    %23 = vrot.lane.b32.xlu0 %v22, 32
    %v24 = vpop.permute.xlu0 %23
    %vm25 = vcmask 523520
    %26 = vst.msk [vmem:[#allocation0] ss:$8 sm:$0x3] %vm25, %v24
    %s28 = sshllo.u32 0, 1
    %v30 = vld [vmem:[#allocation0] sm:%s28]
    %s31 = sshllo.u32 0, 1
    %32 = vst [vmem:[%s1] sm:%s31] %v30
    %s33 = scalar_lea.vmem [#allocation0], 8
    %v34 = vld [vmem:[%s33] sm:%s28]
    %s35 = sshllo.u32 0, 1
    %s36 = scalar_lea.vmem %s1, 1
    %37 = vst [vmem:[%s36] sm:%s35] %v34

// kernel: tile.18
$region0: #{tile.18}
  #allocation0 [shape = 's32[1]{0}', space=sflag, size = 0x4, scoped, tag = 'scoped memory for tile.18']
  %s0 = inlined_call_operand.vmem [shape: f32[16], index: 0, kind: input, shape index: {}]
  %s1 = inlined_call_operand.vmem [shape: f32[8,16], index: 1, kind: output, shape index: {}]
  // Predicated region
  $region2: #{tile.18} parent=0 // pred_check
    _
  $region3: #{tile.18} parent=0 // pred_check_branch
    %3 = sbr.rel (0) target = $region5
  $region4: #{tile.18} parent=0 // pred_region
    _
  $region5: #{tile.18} parent=0 // pred_fallthru
    _
  %v4 = vld [vmem:[%s0] ss:$0 sm:$0xff]
  %5 = vst [vmem:[%s1] sm:$0xff] %v4

// kernel: tile.19
$region0: #{tile.19}
  %s0 = inlined_call_operand.vmem [shape: f32[8,16], index: 0, kind: input, shape index: {}]
  %s1 = inlined_call_operand.vmem [shape: f32[1,128], index: 1, kind: output, shape index: {}]
  $region1: #{tile.19} parent=0
    #allocation0 [shape = 'u8[4096]{0}', space=vmem, size = 0x1000, scoped, tag = 'scoped mem for output reshape']
    %v2 = vld [vmem:[%s0] sm:$0x1]
    %vm3 = vcmask 130048
    %4 = vst.msk [vmem:[#allocation0] sm:$0x1] %vm3, %v2
    %s5 = scalar_lea.vmem %s0, 7
    %v6 = vld [vmem:[%s5] sm:$0x1]
    %7 = vrot.lane.b32.xlu0 %v6, 112
    %v8 = vpop.permute.xlu0 %7
    %vm9 = vcmask 1048448
    %10 = vst.msk [vmem:[#allocation0] sm:$0x1] %vm9, %v8
    %s11 = scalar_lea.vmem %s0, 6
    %v12 = vld [vmem:[%s11] sm:$0x1]
    %13 = vrot.lane.b32.xlu0 %v12, 96
    %v14 = vpop.permute.xlu0 %13
    %vm15 = vcmask 917248
    %16 = vst.msk [vmem:[#allocation0] sm:$0x1] %vm15, %v14
    %s17 = scalar_lea.vmem %s0, 5
    %v18 = vld [vmem:[%s17] sm:$0x1]
    %19 = vrot.lane.b32.xlu0 %v18, 80
    %v20 = vpop.permute.xlu0 %19
    %vm21 = vcmask 786048
    %22 = vst.msk [vmem:[#allocation0] sm:$0x1] %vm21, %v20
    %s23 = scalar_lea.vmem %s0, 4
    %v24 = vld [vmem:[%s23] sm:$0x1]
    %25 = vrot.lane.b32.xlu0 %v24, 64
    %v26 = vpop.permute.xlu0 %25
    %vm27 = vcmask 654848
    %28 = vst.msk [vmem:[#allocation0] sm:$0x1] %vm27, %v26
    %s29 = scalar_lea.vmem %s0, 3
    %v30 = vld [vmem:[%s29] sm:$0x1]
    %31 = vrot.lane.b32.xlu0 %v30, 48
    %v32 = vpop.permute.xlu0 %31
    %vm33 = vcmask 523648
    %34 = vst.msk [vmem:[#allocation0] sm:$0x1] %vm33, %v32
    %s35 = scalar_lea.vmem %s0, 2
    %v36 = vld [vmem:[%s35] sm:$0x1]
    %37 = vrot.lane.b32.xlu0 %v36, 32
    %v38 = vpop.permute.xlu0 %37
    %vm39 = vcmask 392448
    %40 = vst.msk [vmem:[#allocation0] sm:$0x1] %vm39, %v38
    %s41 = scalar_lea.vmem %s0, 1
    %v42 = vld [vmem:[%s41] sm:$0x1]
    %43 = vrot.lane.b32.xlu0 %v42, 16
    %v44 = vpop.permute.xlu0 %43
    %vm45 = vcmask 261248
    %46 = vst.msk [vmem:[#allocation0] sm:$0x1] %vm45, %v44
    %s48 = sshllo.u32 0, 1
    %v50 = vld [vmem:[#allocation0] sm:%s48]
    %s51 = sshllo.u32 0, 1
    %52 = vst [vmem:[%s1] sm:%s51] %v50

// kernel: edge_model_forward.1
$region0: #{edge_model_forward.1}
  #allocation0 [shape = 'u32[]', space=smem, size = 0x4, offset = 0x4, fixed_abs, tag = 'smem constant byte address 0x4 - core index']
  #allocation1 [shape = 'u32[144,128]{1,0:T(1,128)}', space=vmem, size = 0x12000, scoped, tag = 'internal scratch']
  %s0 = inlined_call_operand.vmem [shape: f32[16,160], index: 0, kind: input, shape index: {}]
  %s1 = inlined_call_operand.vmem [shape: f32[160,256], index: 1, kind: input, shape index: {}]
  %s2 = inlined_call_operand.vmem [shape: f32[1,256], index: 2, kind: input, shape index: {}]
  %s3 = inlined_call_operand.vmem [shape: f32[256,128], index: 3, kind: input, shape index: {}]
  %s4 = inlined_call_operand.vmem [shape: f32[1,128], index: 4, kind: input, shape index: {}]
  %s5 = inlined_call_operand.vmem [shape: f32[16,128], index: 5, kind: output, shape index: {}]
  %s6 = sld [smem:[#allocation0]]
  $region30: #{edge_model_forward.1} parent=0
    _
  %s8 = ssub.s32 1, %s6
  %s9 = scalar_select 0, %s8, %s6
  // Predicated region
  $region2: #{edge_model_forward.1} parent=0 // pred_check
    _
  $region3: #{edge_model_forward.1} parent=0 // pred_check_branch
    %11 = sbr.rel (0) target = $region5
  $region4: #{edge_model_forward.1} parent=0 // pred_region
    _
  $region5: #{edge_model_forward.1} parent=0 // pred_fallthru
    _
  // Predicated region
  $region6: #{edge_model_forward.1} parent=0 // pred_check
    _
  $region7: #{edge_model_forward.1} parent=0 // pred_check_branch
    %13 = sbr.rel (0) target = $region9
  $region8: #{edge_model_forward.1} parent=0 // pred_region
    _
  $region9: #{edge_model_forward.1} parent=0 // pred_fallthru
    _
  // Predicated region
  $region10: #{edge_model_forward.1} parent=0 // pred_check
    _
  $region11: #{edge_model_forward.1} parent=0 // pred_check_branch
    %15 = sbr.rel (0) target = $region13
  $region12: #{edge_model_forward.1} parent=0 // pred_region
    _
  $region13: #{edge_model_forward.1} parent=0 // pred_fallthru
    _
  // Predicated region
  $region14: #{edge_model_forward.1} parent=0 // pred_check
    _
  $region15: #{edge_model_forward.1} parent=0 // pred_check_branch
    %17 = sbr.rel (0) target = $region17
  $region16: #{edge_model_forward.1} parent=0 // pred_region
    _
  $region17: #{edge_model_forward.1} parent=0 // pred_fallthru
    _
  // Predicated region
  $region18: #{edge_model_forward.1} parent=0 // pred_check
    _
  $region19: #{edge_model_forward.1} parent=0 // pred_check_branch
    %19 = sbr.rel (0) target = $region21
  $region20: #{edge_model_forward.1} parent=0 // pred_region
    _
  $region21: #{edge_model_forward.1} parent=0 // pred_fallthru
    _
  %v20 = vld [vmem:[%s0] sm:$0xff]
  %v21 = vld [vmem:[%s0 + $0x8] sm:$0xff]
  %v22 = vld [vmem:[%s0 + $0x10] sm:$0xff]
  %v23 = vld [vmem:[%s0 + $0x18] sm:$0xff]
  %v24 = vld [vmem:[%s1] sm:$0xff]
  %v25 = vld [vmem:[%s1 + $0x8] sm:$0xff]
  %v26 = vld [vmem:[%s1 + $0x10] sm:$0xff]
  %v27 = vld [vmem:[%s1 + $0x18] sm:$0xff]
  %v28 = vld [vmem:[%s1 + $0x20] sm:$0xff]
  %v29 = vld [vmem:[%s1 + $0x28] sm:$0xff]
  %v30 = vld [vmem:[%s1 + $0x30] sm:$0xff]
  %v31 = vld [vmem:[%s1 + $0x38] sm:$0xff]
  %v32 = vld [vmem:[%s1 + $0x40] sm:$0xff]
  %v33 = vld [vmem:[%s1 + $0x48] sm:$0xff]
  %v34 = vld [vmem:[%s1 + $0x50] sm:$0xff]
  %v35 = vld [vmem:[%s1 + $0x58] sm:$0xff]
  %v36 = vld [vmem:[%s1 + $0x60] sm:$0xff]
  %v37 = vld [vmem:[%s1 + $0x68] sm:$0xff]
  %v38 = vld [vmem:[%s1 + $0x70] sm:$0xff]
  %v39 = vld [vmem:[%s1 + $0x78] sm:$0xff]
  %v40 = vld [vmem:[%s1 + $0x80] sm:$0xff]
  %v41 = vld [vmem:[%s1 + $0x88] sm:$0xff]
  %v42 = vld [vmem:[%s1 + $0x90] sm:$0xff]
  %v43 = vld [vmem:[%s1 + $0x98] sm:$0xff]
  %v44 = vld [vmem:[%s1 + $0xa0] sm:$0xff]
  %v45 = vld [vmem:[%s1 + $0xa8] sm:$0xff]
  %v46 = vld [vmem:[%s1 + $0xb0] sm:$0xff]
  %v47 = vld [vmem:[%s1 + $0xb8] sm:$0xff]
  %v48 = vld [vmem:[%s1 + $0xc0] sm:$0xff]
  %v49 = vld [vmem:[%s1 + $0xc8] sm:$0xff]
  %v50 = vld [vmem:[%s1 + $0xd0] sm:$0xff]
  %v51 = vld [vmem:[%s1 + $0xd8] sm:$0xff]
  %v52 = vld [vmem:[%s1 + $0xe0] sm:$0xff]
  %v53 = vld [vmem:[%s1 + $0xe8] sm:$0xff]
  %v54 = vld [vmem:[%s1 + $0xf0] sm:$0xff]
  %v55 = vld [vmem:[%s1 + $0xf8] sm:$0xff]
  %v56 = vld [vmem:[%s1 + $0x100] sm:$0xff]
  %v57 = vld [vmem:[%s1 + $0x108] sm:$0xff]
  %v58 = vld [vmem:[%s1 + $0x110] sm:$0xff]
  %v59 = vld [vmem:[%s1 + $0x118] sm:$0xff]
  %v60 = vld [vmem:[%s1 + $0x120] sm:$0xff]
  %v61 = vld [vmem:[%s1 + $0x128] sm:$0xff]
  %v62 = vld [vmem:[%s1 + $0x130] sm:$0xff]
  %v63 = vld [vmem:[%s1 + $0x138] sm:$0xff]
  %v64 = vld [vmem:[%s2] sm:$0x3]
  %v66 = vlaneseq
  %v67 = vshrl.u32 %v66, 7
  %v68 = vsub.s32 0, %v67
  %v69 = vrot.slane %v64, %v68
  %v70 = vlaneseq
  %v71 = vshrl.u32 %v70, 7
  %v72 = vsub.s32 1, %v71
  %v73 = vrot.slane %v64, %v72
  %vm76 = vcmask 261120
  %v78 = vsel %vm76, %v21, 0
  %v81 = vsel %vm76, %v23, 0
  %83 = vmatprep.subr.mxu0 %v25
  %84 = vmatpush1.msra.mxu0 %v24
  %85 = vmatprep.subr.mxu0 %v27
  %86 = vmatpush1.msra.mxu0 %v26
  %87 = vmatprep.subr.mxu0 %v29
  %88 = vmatpush1.msra.mxu0 %v28
  %89 = vmatprep.subr.mxu0 %v31
  %90 = vmatpush1.msra.mxu0 %v30
  %91 = vmatprep.subr.mxu0 %v33
  %92 = vmatpush1.msra.mxu0 %v32
  %93 = vmatprep.subr.mxu0 %v35
  %94 = vmatpush1.msra.mxu0 %v34
  %95 = vmatprep.subr.mxu0 %v37
  %96 = vmatpush1.msra.mxu0 %v36
  %97 = vmatprep.subr.mxu0 %v39
  %98 = vmatpush1.msra.mxu0 %v38
  %99 = vmatprep.subr.mxu0 %v41
  %100 = vmatpush1.msra.mxu0 %v40
  %101 = vmatprep.subr.mxu0 %v43
  %102 = vmatpush1.msra.mxu0 %v42
  %103 = vmatprep.subr.mxu0 %v45
  %104 = vmatpush1.msra.mxu0 %v44
  %105 = vmatprep.subr.mxu0 %v47
  %106 = vmatpush1.msra.mxu0 %v46
  %107 = vmatprep.subr.mxu0 %v49
  %108 = vmatpush1.msra.mxu0 %v48
  %109 = vmatprep.subr.mxu0 %v51
  %110 = vmatpush1.msra.mxu0 %v50
  %111 = vmatprep.subr.mxu0 %v53
  %112 = vmatpush1.msra.mxu0 %v52
  %113 = vmatprep.subr.mxu0 %v55
  %114 = vmatpush1.msra.mxu0 %v54
  %115 = vmatprep.subr.mxu0 %v57
  %116 = vmatpush1.msra.mxu0 %v56
  %117 = vmatprep.subr.mxu0 %v59
  %118 = vmatpush1.msra.mxu0 %v58
  %119 = vmatprep.subr.mxu0 %v61
  %120 = vmatpush1.msra.mxu0 %v60
  %121 = vmatprep.subr.mxu0 %v63
  %122 = vmatpush1.msra.mxu0 %v62
  %123 = vmatprep.subr.mxu0 0.0
  %124 = vmatpush1.msra.mxu0 0.0
  %125 = vmatprep.subr.mxu0 0.0
  %126 = vmatpush1.msra.mxu0 0.0
  %127 = vmatprep.subr.mxu0 0.0
  %128 = vmatpush1.msra.mxu0 0.0
  %129 = vmatprep.subr.mxu0 0.0
  %130 = vmatpush1.msra.mxu0 0.0
  %131 = vmatprep.subr.mxu0 0.0
  %132 = vmatpush1.msra.mxu0 0.0
  %133 = vmatprep.subr.mxu0 0.0
  %134 = vmatpush1.msra.mxu0 0.0
  %135 = vmatprep.subr.mxu0 0.0
  %136 = vmatpush1.msra.mxu0 0.0
  %137 = vmatprep.subr.mxu0 0.0
  %138 = vmatpush1.msra.mxu0 0.0
  %139 = vmatprep.subr.mxu0 0.0
  %140 = vmatpush1.msra.mxu0 0.0
  %141 = vmatprep.subr.mxu0 0.0
  %142 = vmatpush1.msra.mxu0 0.0
  %143 = vmatprep.subr.mxu0 0.0
  %144 = vmatpush1.msra.mxu0 0.0
  %145 = vmatprep.subr.mxu0 0.0
  %146 = vmatpush1.msra.mxu0 0.0
  %147 = vmatprep.mubr.f32.mxu0 %v78
  %148 = vmatmul.mubr.f32.gmra.mrb[0].mxu0 %v20
  %v149 = vpop.f32.mrb[0].mxu0
  %v150 = vadd.f32 %v69, %v149
  %v151 = vpop.f32.mrb[0].mxu0
  %v152 = vadd.f32 %v73, %v151
  %153 = vmatprep.mubr.f32.mxu0 %v81
  %154 = vmatmul.mubr.f32.gmra.mrb[0].mxu0 %v22
  %v155 = vpop.f32.mrb[0].mxu0
  %v156 = vadd.f32 %v69, %v155
  %v157 = vpop.f32.mrb[0].mxu0
  %v158 = vadd.f32 %v73, %v157
  %159 = vdwg.mxu0
  %v160 = vmax.f32 %v150, 0.0
  %v161 = vmax.f32 %v152, 0.0
  %v162 = vmax.f32 %v156, 0.0
  %v163 = vmax.f32 %v158, 0.0
  %v164 = vld [vmem:[%s3] sm:$0xff]
  %v165 = vld [vmem:[%s3 + $0x8] sm:$0xff]
  %v166 = vld [vmem:[%s3 + $0x10] sm:$0xff]
  %v167 = vld [vmem:[%s3 + $0x18] sm:$0xff]
  %v168 = vld [vmem:[%s3 + $0x20] sm:$0xff]
  %v169 = vld [vmem:[%s3 + $0x28] sm:$0xff]
  %v170 = vld [vmem:[%s3 + $0x30] sm:$0xff]
  %v171 = vld [vmem:[%s3 + $0x38] sm:$0xff]
  %v172 = vld [vmem:[%s3 + $0x40] sm:$0xff]
  %v173 = vld [vmem:[%s3 + $0x48] sm:$0xff]
  %v174 = vld [vmem:[%s3 + $0x50] sm:$0xff]
  %v175 = vld [vmem:[%s3 + $0x58] sm:$0xff]
  %v176 = vld [vmem:[%s3 + $0x60] sm:$0xff]
  %v177 = vld [vmem:[%s3 + $0x68] sm:$0xff]
  %v178 = vld [vmem:[%s3 + $0x70] sm:$0xff]
  %v179 = vld [vmem:[%s3 + $0x78] sm:$0xff]
  %v180 = vld [vmem:[%s3 + $0x80] sm:$0xff]
  %v181 = vld [vmem:[%s3 + $0x88] sm:$0xff]
  %v182 = vld [vmem:[%s3 + $0x90] sm:$0xff]
  %v183 = vld [vmem:[%s3 + $0x98] sm:$0xff]
  %v184 = vld [vmem:[%s3 + $0xa0] sm:$0xff]
  %v185 = vld [vmem:[%s3 + $0xa8] sm:$0xff]
  %v186 = vld [vmem:[%s3 + $0xb0] sm:$0xff]
  %v187 = vld [vmem:[%s3 + $0xb8] sm:$0xff]
  %v188 = vld [vmem:[%s3 + $0xc0] sm:$0xff]
  %v189 = vld [vmem:[%s3 + $0xc8] sm:$0xff]
  %v190 = vld [vmem:[%s3 + $0xd0] sm:$0xff]
  %v191 = vld [vmem:[%s3 + $0xd8] sm:$0xff]
  %v192 = vld [vmem:[%s3 + $0xe0] sm:$0xff]
  %v193 = vld [vmem:[%s3 + $0xe8] sm:$0xff]
  %v194 = vld [vmem:[%s3 + $0xf0] sm:$0xff]
  %v195 = vld [vmem:[%s3 + $0xf8] sm:$0xff]
  %v196 = vld [vmem:[%s4] sm:$0x1]
  %v198 = vlaneseq
  %v199 = vshrl.u32 %v198, 7
  %v200 = vsub.s32 0, %v199
  %v201 = vrot.slane %v196, %v200
  %203 = vmatprep.subr.mxu0 0.0
  %204 = vmatpush1.msra.mxu0 %v164
  %205 = vmatprep.subr.mxu0 0.0
  %206 = vmatpush1.msra.mxu0 %v165
  %207 = vmatprep.subr.mxu0 0.0
  %208 = vmatpush1.msra.mxu0 %v166
  %209 = vmatprep.subr.mxu0 0.0
  %210 = vmatpush1.msra.mxu0 %v167
  %211 = vmatprep.subr.mxu0 0.0
  %212 = vmatpush1.msra.mxu0 %v168
  %213 = vmatprep.subr.mxu0 0.0
  %214 = vmatpush1.msra.mxu0 %v169
  %215 = vmatprep.subr.mxu0 0.0
  %216 = vmatpush1.msra.mxu0 %v170
  %217 = vmatprep.subr.mxu0 0.0
  %218 = vmatpush1.msra.mxu0 %v171
  %219 = vmatprep.subr.mxu0 0.0
  %220 = vmatpush1.msra.mxu0 %v172
  %221 = vmatprep.subr.mxu0 0.0
  %222 = vmatpush1.msra.mxu0 %v173
  %223 = vmatprep.subr.mxu0 0.0
  %224 = vmatpush1.msra.mxu0 %v174
  %225 = vmatprep.subr.mxu0 0.0
  %226 = vmatpush1.msra.mxu0 %v175
  %227 = vmatprep.subr.mxu0 0.0
  %228 = vmatpush1.msra.mxu0 %v176
  %229 = vmatprep.subr.mxu0 0.0
  %230 = vmatpush1.msra.mxu0 %v177
  %231 = vmatprep.subr.mxu0 0.0
  %232 = vmatpush1.msra.mxu0 %v178
  %233 = vmatprep.subr.mxu0 0.0
  %234 = vmatpush1.msra.mxu0 %v179
  %235 = vmatprep.subr.mxu0 0.0
  %236 = vmatpush1.msra.mxu0 %v180
  %237 = vmatprep.subr.mxu0 0.0
  %238 = vmatpush1.msra.mxu0 %v181
  %239 = vmatprep.subr.mxu0 0.0
  %240 = vmatpush1.msra.mxu0 %v182
  %241 = vmatprep.subr.mxu0 0.0
  %242 = vmatpush1.msra.mxu0 %v183
  %243 = vmatprep.subr.mxu0 0.0
  %244 = vmatpush1.msra.mxu0 %v184
  %245 = vmatprep.subr.mxu0 0.0
  %246 = vmatpush1.msra.mxu0 %v185
  %247 = vmatprep.subr.mxu0 0.0
  %248 = vmatpush1.msra.mxu0 %v186
  %249 = vmatprep.subr.mxu0 0.0
  %250 = vmatpush1.msra.mxu0 %v187
  %251 = vmatprep.subr.mxu0 0.0
  %252 = vmatpush1.msra.mxu0 %v188
  %253 = vmatprep.subr.mxu0 0.0
  %254 = vmatpush1.msra.mxu0 %v189
  %255 = vmatprep.subr.mxu0 0.0
  %256 = vmatpush1.msra.mxu0 %v190
  %257 = vmatprep.subr.mxu0 0.0
  %258 = vmatpush1.msra.mxu0 %v191
  %259 = vmatprep.subr.mxu0 0.0
  %260 = vmatpush1.msra.mxu0 %v192
  %261 = vmatprep.subr.mxu0 0.0
  %262 = vmatpush1.msra.mxu0 %v193
  %263 = vmatprep.subr.mxu0 0.0
  %264 = vmatpush1.msra.mxu0 %v194
  %265 = vmatprep.subr.mxu0 0.0
  %266 = vmatpush1.msra.mxu0 %v195
  %267 = vmatprep.mubr.f32.mxu0 %v161
  %268 = vmatmul.mubr.f32.gmra.mrb[0].mxu0 %v160
  %v269 = vpop.f32.mrb[0].mxu0
  %v270 = vadd.f32 %v201, %v269
  %v271 = vpop.f32.mrb[0].mxu0
  %272 = vmatprep.mubr.f32.mxu0 %v163
  %273 = vmatmul.mubr.f32.gmra.mrb[0].mxu0 %v162
  %v274 = vpop.f32.mrb[0].mxu0
  %v275 = vadd.f32 %v201, %v274
  %v276 = vpop.f32.mrb[0].mxu0
  %277 = vdwg.mxu0
  %278 = vst [vmem:[%s5] sm:$0xff] %v270
  %279 = vst [vmem:[%s5 + $0x8] sm:$0xff] %v275
  // Predicated region
  $region22: #{edge_model_forward.1} parent=0 // pred_check
    _
  $region23: #{edge_model_forward.1} parent=0 // pred_check_branch
    %281 = sbr.rel (0) target = $region25
  $region24: #{edge_model_forward.1} parent=0 // pred_region
    _
  $region25: #{edge_model_forward.1} parent=0 // pred_fallthru
    _
  // Predicated region
  $region26: #{edge_model_forward.1} parent=0 // pred_check
    _
  $region27: #{edge_model_forward.1} parent=0 // pred_check_branch
    %283 = sbr.rel (0) target = $region29
  $region28: #{edge_model_forward.1} parent=0 // pred_region
    _
  $region29: #{edge_model_forward.1} parent=0 // pred_fallthru
    _

</llo_original>
